<compile_context>
chip_gen: v6e
topology: v6e:2x2x1
jax: 0.10.0
libtpu: 0.0.40
codegen_flags: <defaults>
</compile_context>

<pallas_src>
import functools

import jax
import jax.numpy as jnp
from jax.experimental import pallas as pl
from jax.experimental.pallas import tpu as pltpu


def _round_up(x, m):
    return (x + m - 1) // m * m


def _vae_kernel(
    # batch-tiled inputs
    x_ref, y_ref, eps_ref,
    # encoder params (VMEM-resident across the grid)
    w1ex_ref, w1ey_ref, b1e_ref, w2e_ref, b2e_ref, wml_ref, bml_ref,
    # decoder params
    w1d_ref, b1d_ref, w2d_ref, b2d_ref, wod_ref, bod_ref,
    # gender classifier params
    w1g_ref, b1g_ref, wogr_ref, bog_ref,
    # single lane-dense packed output slab
    out_ref,
    *, latent_dim,
):
    x = x_ref[...]            # (TB, input_dim)
    y = y_ref[...]            # (TB, 1)
    eps = eps_ref[...]        # (TB, latent)

    # ---- Encoder ----
    # cat([x, y]) @ W1  ==  x @ W1[:in]  +  y * W1[in:in+1]   (no concat needed)
    h = jnp.dot(x, w1ex_ref[...], preferred_element_type=jnp.float32)
    h = jnp.maximum(h + y * w1ey_ref[...] + b1e_ref[...], 0.0)
    h = jnp.maximum(
        jnp.dot(h, w2e_ref[...], preferred_element_type=jnp.float32) + b2e_ref[...],
        0.0,
    )
    # Fused mu|logvar projection: one MXU pass instead of two tiny ones.
    ml = jnp.dot(h, wml_ref[...], preferred_element_type=jnp.float32) + bml_ref[...]
    mu = ml[:, :latent_dim]
    logvar = ml[:, latent_dim:]

    # ---- Reparameterize: z = eps * exp(0.5*logvar) + mu ----
    z = eps * jnp.exp(0.5 * logvar) + mu

    # ---- Decoder ----
    hd = jnp.maximum(
        jnp.dot(z, w1d_ref[...], preferred_element_type=jnp.float32) + b1d_ref[...],
        0.0,
    )
    hd = jnp.maximum(
        jnp.dot(hd, w2d_ref[...], preferred_element_type=jnp.float32) + b2d_ref[...],
        0.0,
    )
    recon = jnp.dot(hd, wod_ref[...], preferred_element_type=jnp.float32) + bod_ref[...]

    # ---- Gender classifier ----
    hg = jnp.maximum(
        jnp.dot(z, w1g_ref[...], preferred_element_type=jnp.float32) + b1g_ref[...],
        0.0,
    )
    # N=1 output projection stays off the MXU: VPU multiply + lane reduce.
    logits = jnp.sum(hg * wogr_ref[...], axis=-1, keepdims=True) + bog_ref[...]
    gender = jax.nn.sigmoid(logits)

    # ---- Single lane-dense writeback ----
    packed = jnp.concatenate([recon, gender, mu, logvar, z], axis=-1)
    pad = out_ref.shape[-1] - packed.shape[-1]
    if pad:
        packed = jnp.concatenate(
            [packed, jnp.zeros((packed.shape[0], pad), jnp.float32)], axis=-1)
    out_ref[...] = packed


def vae_forward(x, y, eps, params, *, batch_tile=256):
    """VAE forward. x: [B, input_dim], y: [B], eps: [B, latent_dim].

    Returns (reconstruction, gender_pred, mu, logvar, z) matching the PyTorch
    module's forward (eps supplied explicitly for determinism).
    """
    B, input_dim = x.shape
    (w1e, b1e, w2e, b2e, wmu, bmu, wlv, blv,
     w1d, b1d, w2d, b2d, wod, bod,
     w1g, b1g, wog, bog) = params

    hidden_dim = w1e.shape[1]
    latent_dim = wmu.shape[1]
    output_dim = wod.shape[1]

    # One-time parameter repacking (constant-folded under jit).
    w1e_x = w1e[:input_dim]                      # (input_dim, hidden)
    w1e_y = w1e[input_dim:input_dim + 1]         # (1, hidden)
    wml = jnp.concatenate([wmu, wlv], axis=1)    # (hidden, 2*latent)
    bml = jnp.concatenate([bmu, blv], axis=1)    # (1, 2*latent)
    wog_row = wog.T                              # (1, latent)

    weights = (w1e_x, w1e_y, b1e, w2e, b2e, wml, bml,
               w1d, b1d, w2d, b2d, wod, bod,
               w1g, b1g, wog_row, bog)

    # Batch tiling: rows multiple of 8 (sublane), weights stay resident.
    tb = min(_round_up(B, 8), batch_tile)
    b_pad = _round_up(B, tb)
    y2 = y.reshape(B, 1).astype(jnp.float32)
    if b_pad != B:
        x = jnp.pad(x, ((0, b_pad - B), (0, 0)))
        y2 = jnp.pad(y2, ((0, b_pad - B), (0, 0)))
        eps = jnp.pad(eps, ((0, b_pad - B), (0, 0)))
    grid = (b_pad // tb,)

    packed_width = output_dim + 1 + 3 * latent_dim
    out_lanes = _round_up(packed_width, 128)

    batch_map = lambda i: (i, 0)
    const_map = lambda i: (0, 0)

    in_specs = (
        [pl.BlockSpec((tb, input_dim), batch_map),
         pl.BlockSpec((tb, 1), batch_map),
         pl.BlockSpec((tb, latent_dim), batch_map)]
        + [pl.BlockSpec(w.shape, const_map) for w in weights]
    )
    out_spec = pl.BlockSpec((tb, out_lanes), batch_map)

    # Scheduler hints + VMEM sizing (resident weights + double-buffered tiles).
    flops = 2 * b_pad * (
        input_dim * hidden_dim + hidden_dim * hidden_dim
        + hidden_dim * 2 * latent_dim + latent_dim * hidden_dim
        + hidden_dim * hidden_dim + hidden_dim * output_dim
        + latent_dim * latent_dim + latent_dim)
    param_bytes = sum(int(w.size) * 4 for w in weights)
    act_tile_bytes = tb * (input_dim + 1 + latent_dim + out_lanes) * 4
    inter_tile_bytes = tb * (4 * hidden_dim + 4 * latent_dim) * 4
    bytes_accessed = param_bytes + (b_pad // tb) * act_tile_bytes
    vmem_limit = int(min(
        64 * 1024 * 1024,
        max(4 * 1024 * 1024,
            2 * param_bytes + 4 * act_tile_bytes + 2 * inter_tile_bytes)))

    kernel = functools.partial(_vae_kernel, latent_dim=latent_dim)

    out = pl.pallas_call(
        kernel,
        out_shape=jax.ShapeDtypeStruct((b_pad, out_lanes), jnp.float32),
        grid=grid,
        in_specs=in_specs,
        out_specs=out_spec,
        compiler_params=pltpu.CompilerParams(
            dimension_semantics=("parallel",),
            vmem_limit_bytes=vmem_limit),
        cost_estimate=pl.CostEstimate(
            flops=flops,
            transcendentals=b_pad * (latent_dim + 1),
            bytes_accessed=bytes_accessed),
    )(x, y2, eps, *weights)

    out = out[:B]
    o = output_dim
    recon = out[:, :o]
    gender = out[:, o:o + 1]
    mu = out[:, o + 1:o + 1 + latent_dim]
    logvar = out[:, o + 1 + latent_dim:o + 1 + 2 * latent_dim]
    z = out[:, o + 1 + 2 * latent_dim:o + 1 + 3 * latent_dim]
    return recon, gender, mu, logvar, z


def init_params(key, input_dim, hidden_dim, latent_dim, output_dim):
    """Deterministic synthetic parameter init. Weights are [in, out]."""
    def linear(k, fan_in, fan_out):
        kw, kb = jax.random.split(k)
        bound = 1.0 / jnp.sqrt(fan_in)
        w = jax.random.uniform(kw, (fan_in, fan_out), jnp.float32, -bound, bound)
        b = jax.random.uniform(kb, (1, fan_out), jnp.float32, -bound, bound)
        return w, b

    keys = jax.random.split(key, 9)
    w1e, b1e = linear(keys[0], input_dim + 1, hidden_dim)
    w2e, b2e = linear(keys[1], hidden_dim, hidden_dim)
    wmu, bmu = linear(keys[2], hidden_dim, latent_dim)
    wlv, blv = linear(keys[3], hidden_dim, latent_dim)
    w1d, b1d = linear(keys[4], latent_dim, hidden_dim)
    w2d, b2d = linear(keys[5], hidden_dim, hidden_dim)
    wod, bod = linear(keys[6], hidden_dim, output_dim)
    w1g, b1g = linear(keys[7], latent_dim, latent_dim)
    wog, bog = linear(keys[8], latent_dim, 1)
    return (w1e, b1e, w2e, b2e, wmu, bmu, wlv, blv,
            w1d, b1d, w2d, b2d, wod, bod,
            w1g, b1g, wog, bog)


def _reference_forward(x, y, eps, params):
    """Pure-JAX reference matching the PyTorch module semantics."""
    (w1e, b1e, w2e, b2e, wmu, bmu, wlv, blv,
     w1d, b1d, w2d, b2d, wod, bod,
     w1g, b1g, wog, bog) = params
    xy = jnp.concatenate([x, y[:, None]], axis=1)
    h = jax.nn.relu(xy @ w1e + b1e)
    h = jax.nn.relu(h @ w2e + b2e)
    mu = h @ wmu + bmu
    logvar = h @ wlv + blv
    z = eps * jnp.exp(0.5 * logvar) + mu
    hd = jax.nn.relu(z @ w1d + b1d)
    hd = jax.nn.relu(hd @ w2d + b2d)
    recon = hd @ wod + bod
    hg = jax.nn.relu(z @ w1g + b1g)
    gender = jax.nn.sigmoid(hg @ wog + bog)
    return recon, gender, mu, logvar, z


if __name__ == "__main__":
    B, input_dim, hidden_dim, latent_dim, output_dim = 8, 16, 32, 8, 16

    key = jax.random.PRNGKey(0)
    k_params, k_x, k_y, k_eps = jax.random.split(key, 4)

    params = init_params(k_params, input_dim, hidden_dim, latent_dim, output_dim)
    x = jax.random.normal(k_x, (B, input_dim), jnp.float32)
    y = jax.random.normal(k_y, (B,), jnp.float32)
    # eps for reparameterization generated host-side so the stochastic path is
    # reproducible and checkable against the reference.
    eps = jax.random.normal(k_eps, (B, latent_dim), jnp.float32)

    outs = vae_forward(x, y, eps, params)
    outs = jax.block_until_ready(outs)

    refs = _reference_forward(x, y, eps, params)
    for o, r in zip(outs, refs):
        assert o.shape == r.shape and o.dtype == r.dtype
        assert jnp.allclose(o, r, atol=1e-4, rtol=1e-4), float(jnp.max(jnp.abs(o - r)))

    print("KERNEL_OK")
</pallas_src>

<mosaic_0001>
module attributes {stable_mosaic.version = 11 : i64} {
  func.func @_vae_kernel(%arg0: i32, %arg1: memref<8x16xf32, #tpu.memory_space<vmem>>, %arg2: memref<8x1xf32, #tpu.memory_space<vmem>>, %arg3: memref<8x8xf32, #tpu.memory_space<vmem>>, %arg4: memref<16x32xf32, #tpu.memory_space<vmem>>, %arg5: memref<1x32xf32, #tpu.memory_space<vmem>>, %arg6: memref<1x32xf32, #tpu.memory_space<vmem>>, %arg7: memref<32x32xf32, #tpu.memory_space<vmem>>, %arg8: memref<1x32xf32, #tpu.memory_space<vmem>>, %arg9: memref<32x16xf32, #tpu.memory_space<vmem>>, %arg10: memref<1x16xf32, #tpu.memory_space<vmem>>, %arg11: memref<8x32xf32, #tpu.memory_space<vmem>>, %arg12: memref<1x32xf32, #tpu.memory_space<vmem>>, %arg13: memref<32x32xf32, #tpu.memory_space<vmem>>, %arg14: memref<1x32xf32, #tpu.memory_space<vmem>>, %arg15: memref<32x16xf32, #tpu.memory_space<vmem>>, %arg16: memref<1x16xf32, #tpu.memory_space<vmem>>, %arg17: memref<8x8xf32, #tpu.memory_space<vmem>>, %arg18: memref<1x8xf32, #tpu.memory_space<vmem>>, %arg19: memref<1x8xf32, #tpu.memory_space<vmem>>, %arg20: memref<1x1xf32, #tpu.memory_space<vmem>>, %arg21: memref<8x128xf32, #tpu.memory_space<vmem>>) attributes {dimension_semantics = [#tpu.dimension_semantics<parallel>], iteration_bounds = array<i64: 1>, scalar_prefetch = 0 : i64, scratch_operands = 0 : i64, tpu.core_type = #tpu.core_type<tc>, window_params = [{transform_indices = @transform_0, window_bounds = array<i64: 8, 16>}, {transform_indices = @transform_1, window_bounds = array<i64: 8, 1>}, {transform_indices = @transform_2, window_bounds = array<i64: 8, 8>}, {pipeline_mode = #tpu.pipeline_mode<synchronous>, transform_indices = @transform_3, window_bounds = array<i64: 16, 32>}, {pipeline_mode = #tpu.pipeline_mode<synchronous>, transform_indices = @transform_4, window_bounds = array<i64: 1, 32>}, {pipeline_mode = #tpu.pipeline_mode<synchronous>, transform_indices = @transform_5, window_bounds = array<i64: 1, 32>}, {pipeline_mode = #tpu.pipeline_mode<synchronous>, transform_indices = @transform_6, window_bounds = array<i64: 32, 32>}, {pipeline_mode = #tpu.pipeline_mode<synchronous>, transform_indices = @transform_7, window_bounds = array<i64: 1, 32>}, {pipeline_mode = #tpu.pipeline_mode<synchronous>, transform_indices = @transform_8, window_bounds = array<i64: 32, 16>}, {pipeline_mode = #tpu.pipeline_mode<synchronous>, transform_indices = @transform_9, window_bounds = array<i64: 1, 16>}, {pipeline_mode = #tpu.pipeline_mode<synchronous>, transform_indices = @transform_10, window_bounds = array<i64: 8, 32>}, {pipeline_mode = #tpu.pipeline_mode<synchronous>, transform_indices = @transform_11, window_bounds = array<i64: 1, 32>}, {pipeline_mode = #tpu.pipeline_mode<synchronous>, transform_indices = @transform_12, window_bounds = array<i64: 32, 32>}, {pipeline_mode = #tpu.pipeline_mode<synchronous>, transform_indices = @transform_13, window_bounds = array<i64: 1, 32>}, {pipeline_mode = #tpu.pipeline_mode<synchronous>, transform_indices = @transform_14, window_bounds = array<i64: 32, 16>}, {pipeline_mode = #tpu.pipeline_mode<synchronous>, transform_indices = @transform_15, window_bounds = array<i64: 1, 16>}, {pipeline_mode = #tpu.pipeline_mode<synchronous>, transform_indices = @transform_16, window_bounds = array<i64: 8, 8>}, {pipeline_mode = #tpu.pipeline_mode<synchronous>, transform_indices = @transform_17, window_bounds = array<i64: 1, 8>}, {pipeline_mode = #tpu.pipeline_mode<synchronous>, transform_indices = @transform_18, window_bounds = array<i64: 1, 8>}, {pipeline_mode = #tpu.pipeline_mode<synchronous>, transform_indices = @transform_19, window_bounds = array<i64: 1, 1>}, {transform_indices = @transform_20, window_bounds = array<i64: 8, 128>}]} {
    %c0 = arith.constant 0 : index
    %c0_0 = arith.constant 0 : index
    %0 = vector.load %arg1[%c0, %c0_0] : memref<8x16xf32, #tpu.memory_space<vmem>>, vector<8x16xf32>
    %c0_1 = arith.constant 0 : index
    %c0_2 = arith.constant 0 : index
    %1 = vector.load %arg2[%c0_1, %c0_2] : memref<8x1xf32, #tpu.memory_space<vmem>>, vector<8x1xf32>
    %c0_3 = arith.constant 0 : index
    %c0_4 = arith.constant 0 : index
    %2 = vector.load %arg3[%c0_3, %c0_4] : memref<8x8xf32, #tpu.memory_space<vmem>>, vector<8x8xf32>
    %c0_5 = arith.constant 0 : index
    %c0_6 = arith.constant 0 : index
    %3 = vector.load %arg4[%c0_5, %c0_6] : memref<16x32xf32, #tpu.memory_space<vmem>>, vector<16x32xf32>
    %cst = arith.constant dense<0.000000e+00> : vector<8x32xf32>
    %4 = tpu.matmul %0, %3, %cst {dimension_numbers = #tpu.dot_dimension_numbers<[1], [0], [0], [1], [0, 0, 1, 1], [], []>} : vector<8x16xf32>, vector<16x32xf32>, vector<8x32xf32> -> vector<8x32xf32>
    %c0_7 = arith.constant 0 : index
    %c0_8 = arith.constant 0 : index
    %5 = vector.load %arg5[%c0_7, %c0_8] : memref<1x32xf32, #tpu.memory_space<vmem>>, vector<1x32xf32>
    %6 = vector.broadcast %1 : vector<8x1xf32> to vector<8x32xf32>
    %7 = vector.broadcast %5 : vector<1x32xf32> to vector<8x32xf32>
    %8 = arith.mulf %6, %7 : vector<8x32xf32>
    %9 = arith.addf %4, %8 : vector<8x32xf32>
    %c0_9 = arith.constant 0 : index
    %c0_10 = arith.constant 0 : index
    %10 = vector.load %arg6[%c0_9, %c0_10] : memref<1x32xf32, #tpu.memory_space<vmem>>, vector<1x32xf32>
    %11 = vector.broadcast %10 : vector<1x32xf32> to vector<8x32xf32>
    %12 = arith.addf %9, %11 : vector<8x32xf32>
    %cst_11 = arith.constant 0.000000e+00 : f32
    %13 = vector.broadcast %cst_11 : f32 to vector<8x32xf32>
    %14 = arith.maximumf %12, %13 : vector<8x32xf32>
    %c0_12 = arith.constant 0 : index
    %c0_13 = arith.constant 0 : index
    %15 = vector.load %arg7[%c0_12, %c0_13] : memref<32x32xf32, #tpu.memory_space<vmem>>, vector<32x32xf32>
    %cst_14 = arith.constant dense<0.000000e+00> : vector<8x32xf32>
    %16 = tpu.matmul %14, %15, %cst_14 {dimension_numbers = #tpu.dot_dimension_numbers<[1], [0], [0], [1], [0, 0, 1, 1], [], []>} : vector<8x32xf32>, vector<32x32xf32>, vector<8x32xf32> -> vector<8x32xf32>
    %c0_15 = arith.constant 0 : index
    %c0_16 = arith.constant 0 : index
    %17 = vector.load %arg8[%c0_15, %c0_16] : memref<1x32xf32, #tpu.memory_space<vmem>>, vector<1x32xf32>
    %18 = vector.broadcast %17 : vector<1x32xf32> to vector<8x32xf32>
    %19 = arith.addf %16, %18 : vector<8x32xf32>
    %cst_17 = arith.constant 0.000000e+00 : f32
    %20 = vector.broadcast %cst_17 : f32 to vector<8x32xf32>
    %21 = arith.maximumf %19, %20 : vector<8x32xf32>
    %c0_18 = arith.constant 0 : index
    %c0_19 = arith.constant 0 : index
    %22 = vector.load %arg9[%c0_18, %c0_19] : memref<32x16xf32, #tpu.memory_space<vmem>>, vector<32x16xf32>
    %cst_20 = arith.constant dense<0.000000e+00> : vector<8x16xf32>
    %23 = tpu.matmul %21, %22, %cst_20 {dimension_numbers = #tpu.dot_dimension_numbers<[1], [0], [0], [1], [0, 0, 1, 1], [], []>} : vector<8x32xf32>, vector<32x16xf32>, vector<8x16xf32> -> vector<8x16xf32>
    %c0_21 = arith.constant 0 : index
    %c0_22 = arith.constant 0 : index
    %24 = vector.load %arg10[%c0_21, %c0_22] : memref<1x16xf32, #tpu.memory_space<vmem>>, vector<1x16xf32>
    %25 = vector.broadcast %24 : vector<1x16xf32> to vector<8x16xf32>
    %26 = arith.addf %23, %25 : vector<8x16xf32>
    %27 = vector.extract_strided_slice %26 {offsets = [0, 0], sizes = [8, 8], strides = [1, 1]} : vector<8x16xf32> to vector<8x8xf32>
    %28 = vector.extract_strided_slice %26 {offsets = [0, 8], sizes = [8, 8], strides = [1, 1]} : vector<8x16xf32> to vector<8x8xf32>
    %cst_23 = arith.constant 5.000000e-01 : f32
    %29 = vector.broadcast %cst_23 : f32 to vector<8x8xf32>
    %30 = arith.mulf %29, %28 : vector<8x8xf32>
    %31 = math.exp %30 : vector<8x8xf32>
    %32 = arith.mulf %2, %31 : vector<8x8xf32>
    %33 = arith.addf %32, %27 : vector<8x8xf32>
    %c0_24 = arith.constant 0 : index
    %c0_25 = arith.constant 0 : index
    %34 = vector.load %arg11[%c0_24, %c0_25] : memref<8x32xf32, #tpu.memory_space<vmem>>, vector<8x32xf32>
    %cst_26 = arith.constant dense<0.000000e+00> : vector<8x32xf32>
    %35 = tpu.matmul %33, %34, %cst_26 {dimension_numbers = #tpu.dot_dimension_numbers<[1], [0], [0], [1], [0, 0, 1, 1], [], []>} : vector<8x8xf32>, vector<8x32xf32>, vector<8x32xf32> -> vector<8x32xf32>
    %c0_27 = arith.constant 0 : index
    %c0_28 = arith.constant 0 : index
    %36 = vector.load %arg12[%c0_27, %c0_28] : memref<1x32xf32, #tpu.memory_space<vmem>>, vector<1x32xf32>
    %37 = vector.broadcast %36 : vector<1x32xf32> to vector<8x32xf32>
    %38 = arith.addf %35, %37 : vector<8x32xf32>
    %cst_29 = arith.constant 0.000000e+00 : f32
    %39 = vector.broadcast %cst_29 : f32 to vector<8x32xf32>
    %40 = arith.maximumf %38, %39 : vector<8x32xf32>
    %c0_30 = arith.constant 0 : index
    %c0_31 = arith.constant 0 : index
    %41 = vector.load %arg13[%c0_30, %c0_31] : memref<32x32xf32, #tpu.memory_space<vmem>>, vector<32x32xf32>
    %cst_32 = arith.constant dense<0.000000e+00> : vector<8x32xf32>
    %42 = tpu.matmul %40, %41, %cst_32 {dimension_numbers = #tpu.dot_dimension_numbers<[1], [0], [0], [1], [0, 0, 1, 1], [], []>} : vector<8x32xf32>, vector<32x32xf32>, vector<8x32xf32> -> vector<8x32xf32>
    %c0_33 = arith.constant 0 : index
    %c0_34 = arith.constant 0 : index
    %43 = vector.load %arg14[%c0_33, %c0_34] : memref<1x32xf32, #tpu.memory_space<vmem>>, vector<1x32xf32>
    %44 = vector.broadcast %43 : vector<1x32xf32> to vector<8x32xf32>
    %45 = arith.addf %42, %44 : vector<8x32xf32>
    %cst_35 = arith.constant 0.000000e+00 : f32
    %46 = vector.broadcast %cst_35 : f32 to vector<8x32xf32>
    %47 = arith.maximumf %45, %46 : vector<8x32xf32>
    %c0_36 = arith.constant 0 : index
    %c0_37 = arith.constant 0 : index
    %48 = vector.load %arg15[%c0_36, %c0_37] : memref<32x16xf32, #tpu.memory_space<vmem>>, vector<32x16xf32>
    %cst_38 = arith.constant dense<0.000000e+00> : vector<8x16xf32>
    %49 = tpu.matmul %47, %48, %cst_38 {dimension_numbers = #tpu.dot_dimension_numbers<[1], [0], [0], [1], [0, 0, 1, 1], [], []>} : vector<8x32xf32>, vector<32x16xf32>, vector<8x16xf32> -> vector<8x16xf32>
    %c0_39 = arith.constant 0 : index
    %c0_40 = arith.constant 0 : index
    %50 = vector.load %arg16[%c0_39, %c0_40] : memref<1x16xf32, #tpu.memory_space<vmem>>, vector<1x16xf32>
    %51 = vector.broadcast %50 : vector<1x16xf32> to vector<8x16xf32>
    %52 = arith.addf %49, %51 : vector<8x16xf32>
    %c0_41 = arith.constant 0 : index
    %c0_42 = arith.constant 0 : index
    %53 = vector.load %arg17[%c0_41, %c0_42] : memref<8x8xf32, #tpu.memory_space<vmem>>, vector<8x8xf32>
    %cst_43 = arith.constant dense<0.000000e+00> : vector<8x8xf32>
    %54 = tpu.matmul %33, %53, %cst_43 {dimension_numbers = #tpu.dot_dimension_numbers<[1], [0], [0], [1], [0, 0, 1, 1], [], []>} : vector<8x8xf32>, vector<8x8xf32>, vector<8x8xf32> -> vector<8x8xf32>
    %c0_44 = arith.constant 0 : index
    %c0_45 = arith.constant 0 : index
    %55 = vector.load %arg18[%c0_44, %c0_45] : memref<1x8xf32, #tpu.memory_space<vmem>>, vector<1x8xf32>
    %56 = vector.broadcast %55 : vector<1x8xf32> to vector<8x8xf32>
    %57 = arith.addf %54, %56 : vector<8x8xf32>
    %cst_46 = arith.constant 0.000000e+00 : f32
    %58 = vector.broadcast %cst_46 : f32 to vector<8x8xf32>
    %59 = arith.maximumf %57, %58 : vector<8x8xf32>
    %c0_47 = arith.constant 0 : index
    %c0_48 = arith.constant 0 : index
    %60 = vector.load %arg19[%c0_47, %c0_48] : memref<1x8xf32, #tpu.memory_space<vmem>>, vector<1x8xf32>
    %61 = vector.broadcast %60 : vector<1x8xf32> to vector<8x8xf32>
    %62 = arith.mulf %59, %61 : vector<8x8xf32>
    %cst_49 = arith.constant dense<0.000000e+00> : vector<8xf32>
    %63 = vector.multi_reduction <add>, %62, %cst_49 [1] : vector<8x8xf32> to vector<8xf32>
    %64 = vector.shape_cast %63 : vector<8xf32> to vector<8x1xf32>
    %c0_50 = arith.constant 0 : index
    %c0_51 = arith.constant 0 : index
    %65 = vector.load %arg20[%c0_50, %c0_51] : memref<1x1xf32, #tpu.memory_space<vmem>>, vector<1x1xf32>
    %66 = vector.broadcast %65 : vector<1x1xf32> to vector<8x1xf32>
    %67 = arith.addf %64, %66 : vector<8x1xf32>
    %68 = arith.negf %67 : vector<8x1xf32>
    %69 = math.exp %68 : vector<8x1xf32>
    %cst_52 = arith.constant 1.000000e+00 : f32
    %70 = vector.broadcast %cst_52 : f32 to vector<8x1xf32>
    %71 = arith.addf %70, %69 : vector<8x1xf32>
    %72 = arith.divf %70, %71 : vector<8x1xf32>
    %73 = tpu.concatenate %52, %72, %27, %28, %33 in 1 : vector<8x16xf32>, vector<8x1xf32>, vector<8x8xf32>, vector<8x8xf32>, vector<8x8xf32> -> vector<8x41xf32>
    %cst_53 = arith.constant 0.000000e+00 : f32
    %74 = vector.broadcast %cst_53 : f32 to vector<8x87xf32>
    %75 = tpu.concatenate %73, %74 in 1 : vector<8x41xf32>, vector<8x87xf32> -> vector<8x128xf32>
    %c0_54 = arith.constant 0 : index
    %c0_55 = arith.constant 0 : index
    %76 = vector.load %arg21[%c0_54, %c0_55] : memref<8x128xf32, #tpu.memory_space<vmem>>, vector<8x128xf32>
    tpu.vector_store %arg21[%c0_54, %c0_55], %75 {strides = array<i32>} : memref<8x128xf32, #tpu.memory_space<vmem>>, vector<8x128xf32>,
    return
  }
  func.func @transform_0(%arg0: i32) -> (i32, i32) {
    %c0_i32 = arith.constant 0 : i32
    %c0_i32_0 = arith.constant 0 : i32
    return %arg0, %c0_i32 : i32, i32
  }
  func.func @transform_1(%arg0: i32) -> (i32, i32) {
    %c0_i32 = arith.constant 0 : i32
    %c0_i32_0 = arith.constant 0 : i32
    return %arg0, %c0_i32 : i32, i32
  }
  func.func @transform_2(%arg0: i32) -> (i32, i32) {
    %c0_i32 = arith.constant 0 : i32
    %c0_i32_0 = arith.constant 0 : i32
    return %arg0, %c0_i32 : i32, i32
  }
  func.func @transform_3(%arg0: i32) -> (i32, i32) {
    %c0_i32 = arith.constant 0 : i32
    %c0_i32_0 = arith.constant 0 : i32
    %c0_i32_1 = arith.constant 0 : i32
    return %c0_i32, %c0_i32_0 : i32, i32
  }
  func.func @transform_4(%arg0: i32) -> (i32, i32) {
    %c0_i32 = arith.constant 0 : i32
    %c0_i32_0 = arith.constant 0 : i32
    %c0_i32_1 = arith.constant 0 : i32
    return %c0_i32, %c0_i32_0 : i32, i32
  }
  func.func @transform_5(%arg0: i32) -> (i32, i32) {
    %c0_i32 = arith.constant 0 : i32
    %c0_i32_0 = arith.constant 0 : i32
    %c0_i32_1 = arith.constant 0 : i32
    return %c0_i32, %c0_i32_0 : i32, i32
  }
  func.func @transform_6(%arg0: i32) -> (i32, i32) {
    %c0_i32 = arith.constant 0 : i32
    %c0_i32_0 = arith.constant 0 : i32
    %c0_i32_1 = arith.constant 0 : i32
    return %c0_i32, %c0_i32_0 : i32, i32
  }
  func.func @transform_7(%arg0: i32) -> (i32, i32) {
    %c0_i32 = arith.constant 0 : i32
    %c0_i32_0 = arith.constant 0 : i32
    %c0_i32_1 = arith.constant 0 : i32
    return %c0_i32, %c0_i32_0 : i32, i32
  }
  func.func @transform_8(%arg0: i32) -> (i32, i32) {
    %c0_i32 = arith.constant 0 : i32
    %c0_i32_0 = arith.constant 0 : i32
    %c0_i32_1 = arith.constant 0 : i32
    return %c0_i32, %c0_i32_0 : i32, i32
  }
  func.func @transform_9(%arg0: i32) -> (i32, i32) {
    %c0_i32 = arith.constant 0 : i32
    %c0_i32_0 = arith.constant 0 : i32
    %c0_i32_1 = arith.constant 0 : i32
    return %c0_i32, %c0_i32_0 : i32, i32
  }
  func.func @transform_10(%arg0: i32) -> (i32, i32) {
    %c0_i32 = arith.constant 0 : i32
    %c0_i32_0 = arith.constant 0 : i32
    %c0_i32_1 = arith.constant 0 : i32
    return %c0_i32, %c0_i32_0 : i32, i32
  }
  func.func @transform_11(%arg0: i32) -> (i32, i32) {
    %c0_i32 = arith.constant 0 : i32
    %c0_i32_0 = arith.constant 0 : i32
    %c0_i32_1 = arith.constant 0 : i32
    return %c0_i32, %c0_i32_0 : i32, i32
  }
  func.func @transform_12(%arg0: i32) -> (i32, i32) {
    %c0_i32 = arith.constant 0 : i32
    %c0_i32_0 = arith.constant 0 : i32
    %c0_i32_1 = arith.constant 0 : i32
    return %c0_i32, %c0_i32_0 : i32, i32
  }
  func.func @transform_13(%arg0: i32) -> (i32, i32) {
    %c0_i32 = arith.constant 0 : i32
    %c0_i32_0 = arith.constant 0 : i32
    %c0_i32_1 = arith.constant 0 : i32
    return %c0_i32, %c0_i32_0 : i32, i32
  }
  func.func @transform_14(%arg0: i32) -> (i32, i32) {
    %c0_i32 = arith.constant 0 : i32
    %c0_i32_0 = arith.constant 0 : i32
    %c0_i32_1 = arith.constant 0 : i32
    return %c0_i32, %c0_i32_0 : i32, i32
  }
  func.func @transform_15(%arg0: i32) -> (i32, i32) {
    %c0_i32 = arith.constant 0 : i32
    %c0_i32_0 = arith.constant 0 : i32
    %c0_i32_1 = arith.constant 0 : i32
    return %c0_i32, %c0_i32_0 : i32, i32
  }
  func.func @transform_16(%arg0: i32) -> (i32, i32) {
    %c0_i32 = arith.constant 0 : i32
    %c0_i32_0 = arith.constant 0 : i32
    %c0_i32_1 = arith.constant 0 : i32
    return %c0_i32, %c0_i32_0 : i32, i32
  }
  func.func @transform_17(%arg0: i32) -> (i32, i32) {
    %c0_i32 = arith.constant 0 : i32
    %c0_i32_0 = arith.constant 0 : i32
    %c0_i32_1 = arith.constant 0 : i32
    return %c0_i32, %c0_i32_0 : i32, i32
  }
  func.func @transform_18(%arg0: i32) -> (i32, i32) {
    %c0_i32 = arith.constant 0 : i32
    %c0_i32_0 = arith.constant 0 : i32
    %c0_i32_1 = arith.constant 0 : i32
    return %c0_i32, %c0_i32_0 : i32, i32
  }
  func.func @transform_19(%arg0: i32) -> (i32, i32) {
    %c0_i32 = arith.constant 0 : i32
    %c0_i32_0 = arith.constant 0 : i32
    %c0_i32_1 = arith.constant 0 : i32
    return %c0_i32, %c0_i32_0 : i32, i32
  }
  func.func @transform_20(%arg0: i32) -> (i32, i32) {
    %c0_i32 = arith.constant 0 : i32
    %c0_i32_0 = arith.constant 0 : i32
    return %arg0, %c0_i32 : i32, i32
  }
}

</mosaic_0001>

<llo_original>
// kernel: tpu_custom_call.1
$region0: #{tpu_custom_call.1}
  #allocation0 [shape = 'u32[]', space=smem, size = 0x4, offset = 0x4, fixed_abs, tag = 'smem constant byte address 0x4 - core index']
  #allocation1 [shape = 'u32[144,128]{1,0:T(1,128)}', space=vmem, size = 0x12000, scoped, tag = 'internal scratch']
  #allocation2 [shape = 'f32[1,1]{1,0:T(1,128)S(1)}', space=vmem, size = 0x200, scoped, tag = 'scoped memory for tpu_custom_call.1']
  %s0 = inlined_call_operand.vmem [shape: f32[8,16], index: 0, kind: input, shape index: {}]
  %s1 = inlined_call_operand.vmem [shape: f32[8,1], index: 1, kind: input, shape index: {}]
  %s2 = inlined_call_operand.hbm [shape: f32[8,8], index: 2, kind: input, shape index: {}]
  %s3 = inlined_call_operand.vmem [shape: f32[16,32], index: 3, kind: input, shape index: {}]
  %s4 = inlined_call_operand.hbm [shape: f32[1,32], index: 4, kind: input, shape index: {}]
  %s5 = inlined_call_operand.hbm [shape: f32[1,32], index: 5, kind: input, shape index: {}]
  %s6 = inlined_call_operand.vmem [shape: f32[32,32], index: 6, kind: input, shape index: {}]
  %s7 = inlined_call_operand.hbm [shape: f32[1,32], index: 7, kind: input, shape index: {}]
  %s8 = inlined_call_operand.vmem [shape: f32[32,16], index: 8, kind: input, shape index: {}]
  %s9 = inlined_call_operand.hbm [shape: f32[1,16], index: 9, kind: input, shape index: {}]
  %s10 = inlined_call_operand.hbm [shape: f32[8,32], index: 10, kind: input, shape index: {}]
  %s11 = inlined_call_operand.hbm [shape: f32[1,32], index: 11, kind: input, shape index: {}]
  %s12 = inlined_call_operand.vmem [shape: f32[32,32], index: 12, kind: input, shape index: {}]
  %s13 = inlined_call_operand.vmem [shape: f32[1,32], index: 13, kind: input, shape index: {}]
  %s14 = inlined_call_operand.vmem [shape: f32[32,16], index: 14, kind: input, shape index: {}]
  %s15 = inlined_call_operand.vmem [shape: f32[1,16], index: 15, kind: input, shape index: {}]
  %s16 = inlined_call_operand.vmem [shape: f32[8,8], index: 16, kind: input, shape index: {}]
  %s17 = inlined_call_operand.vmem [shape: f32[1,8], index: 17, kind: input, shape index: {}]
  %s18 = inlined_call_operand.vmem [shape: f32[1,8], index: 18, kind: input, shape index: {}]
  %s19 = inlined_call_operand.<no memory space> [shape: f32[1,1], index: 19, kind: input, shape index: {}]
  %s20 = inlined_call_operand.hbm [shape: f32[8,128], index: 20, kind: output, shape index: {}]
  %s21 = sld [smem:[#allocation0]]
  $region118: #{tpu_custom_call.1} parent=0
    _
  %s23 = ssub.s32 1, %s21
  %s24 = scalar_select 0, %s23, %s21
  %v25 = vstv %s19
  %26 = vst [vmem:[#allocation2] sm:$0x1] %v25
  $region1: #{tpu_custom_call.1} parent=0
    #allocation3 [shape = 'u8[4096]{0}', space=vmem, size = 0x1000, scoped, tag = 'input window, operand 2, single buffered']
    #allocation4 [shape = 's32[1]{0}', space=sflag, size = 0x4, scoped, tag = 'scoped memory for tpu_custom_call.1']
    #allocation5 [shape = 's32[1]{0}', space=sflag, size = 0x4, scoped, tag = 'scoped memory for tpu_custom_call.1']
    #allocation6 [shape = 'u8[512]{0}', space=vmem, size = 0x400, scoped, tag = 'input window, operand 4, single buffered']
    #allocation7 [shape = 's32[1]{0}', space=sflag, size = 0x4, scoped, tag = 'scoped memory for tpu_custom_call.1']
    #allocation8 [shape = 'u8[512]{0}', space=vmem, size = 0x400, scoped, tag = 'input window, operand 5, single buffered']
    #allocation9 [shape = 'u8[512]{0}', space=vmem, size = 0x400, scoped, tag = 'input window, operand 7, single buffered']
    #allocation10 [shape = 's32[1]{0}', space=sflag, size = 0x4, scoped, tag = 'scoped memory for tpu_custom_call.1']
    #allocation11 [shape = 'u8[512]{0}', space=vmem, size = 0x400, scoped, tag = 'input window, operand 9, single buffered']
    #allocation12 [shape = 'u8[4096]{0}', space=vmem, size = 0x1000, scoped, tag = 'input window, operand 10, single buffered']
    #allocation13 [shape = 's32[1]{0}', space=sflag, size = 0x4, scoped, tag = 'scoped memory for tpu_custom_call.1']
    #allocation14 [shape = 'u8[512]{0}', space=vmem, size = 0x400, scoped, tag = 'input window, operand 11, single buffered']
    #allocation15 [shape = 'u8[4096]{0}', space=vmem, size = 0x1000, scoped, tag = 'output window, operand 0, single buffered']
    %27 = vsyncpa [#allocation4], 0
    %28 = vsyncpa [#allocation7], 0
    %29 = vsyncpa [#allocation10], 0
    %30 = vsyncpa [#allocation13], 0
    %31 = vsyncpa [#allocation5], 0
    // Predicated region
    $region2: #{tpu_custom_call.1} parent=1 // pred_check
      _
    $region3: #{tpu_custom_call.1} parent=1 // pred_check_branch
      %33 = sbr.rel (0) target = $region5
    $region4: #{tpu_custom_call.1} parent=1 // pred_region
      _
    $region5: #{tpu_custom_call.1} parent=1 // pred_fallthru
      _
    // Predicated region
    $region6: #{tpu_custom_call.1} parent=1 // pred_check
      _
    $region7: #{tpu_custom_call.1} parent=1 // pred_check_branch
      %35 = sbr.rel (0) target = $region9
    $region8: #{tpu_custom_call.1} parent=1 // pred_region
      _
    $region9: #{tpu_custom_call.1} parent=1 // pred_fallthru
      _
    // Predicated region
    $region10: #{tpu_custom_call.1} parent=1 // pred_check
      _
    $region11: #{tpu_custom_call.1} parent=1 // pred_check_branch
      %37 = sbr.rel (0) target = $region13
    $region12: #{tpu_custom_call.1} parent=1 // pred_region
      %s39 = ssub.s32 128, 128
      %40 = vsyncadd [#allocation4], %s39
      %s42 = sshll.u32 [#allocation3], 4
      %s43 = int_to_ptr.vmem [resolvable:$true] %s42
      %45 = dma.hbm_to_vmem [thread:$0]  %s2, 128, %s43, [#allocation4]
    $region13: #{tpu_custom_call.1} parent=1 // pred_fallthru
      _
    // Predicated region
    $region14: #{tpu_custom_call.1} parent=1 // pred_check
      _
    $region15: #{tpu_custom_call.1} parent=1 // pred_check_branch
      %47 = sbr.rel (0) target = $region17
    $region16: #{tpu_custom_call.1} parent=1 // pred_region
      _
    $region17: #{tpu_custom_call.1} parent=1 // pred_fallthru
      _
    // Predicated region
    $region18: #{tpu_custom_call.1} parent=1 // pred_check
      _
    $region19: #{tpu_custom_call.1} parent=1 // pred_check_branch
      %49 = sbr.rel (0) target = $region21
    $region20: #{tpu_custom_call.1} parent=1 // pred_region
      %s51 = ssub.s32 16, 16
      %52 = vsyncadd [#allocation7], %s51
      %s54 = sshll.u32 [#allocation6], 4
      %s55 = int_to_ptr.vmem [resolvable:$true] %s54
      %57 = dma.hbm_to_vmem [thread:$0]  %s4, 16, %s55, [#allocation7]
    $region21: #{tpu_custom_call.1} parent=1 // pred_fallthru
      _
    // Predicated region
    $region22: #{tpu_custom_call.1} parent=1 // pred_check
      _
    $region23: #{tpu_custom_call.1} parent=1 // pred_check_branch
      %59 = sbr.rel (0) target = $region25
    $region24: #{tpu_custom_call.1} parent=1 // pred_region
      %s61 = ssub.s32 16, 16
      %62 = vsyncadd [#allocation7], %s61
      %s64 = sshll.u32 [#allocation8], 4
      %s65 = int_to_ptr.vmem [resolvable:$true] %s64
      %67 = dma.hbm_to_vmem [thread:$0]  %s5, 16, %s65, [#allocation7]
    $region25: #{tpu_custom_call.1} parent=1 // pred_fallthru
      _
    // Predicated region
    $region26: #{tpu_custom_call.1} parent=1 // pred_check
      _
    $region27: #{tpu_custom_call.1} parent=1 // pred_check_branch
      %69 = sbr.rel (0) target = $region29
    $region28: #{tpu_custom_call.1} parent=1 // pred_region
      _
    $region29: #{tpu_custom_call.1} parent=1 // pred_fallthru
      _
    // Predicated region
    $region30: #{tpu_custom_call.1} parent=1 // pred_check
      _
    $region31: #{tpu_custom_call.1} parent=1 // pred_check_branch
      %71 = sbr.rel (0) target = $region33
    $region32: #{tpu_custom_call.1} parent=1 // pred_region
      %s73 = ssub.s32 16, 16
      %74 = vsyncadd [#allocation10], %s73
      %s76 = sshll.u32 [#allocation9], 4
      %s77 = int_to_ptr.vmem [resolvable:$true] %s76
      %79 = dma.hbm_to_vmem [thread:$0]  %s7, 16, %s77, [#allocation10]
    $region33: #{tpu_custom_call.1} parent=1 // pred_fallthru
      _
    // Predicated region
    $region34: #{tpu_custom_call.1} parent=1 // pred_check
      _
    $region35: #{tpu_custom_call.1} parent=1 // pred_check_branch
      %81 = sbr.rel (0) target = $region37
    $region36: #{tpu_custom_call.1} parent=1 // pred_region
      _
    $region37: #{tpu_custom_call.1} parent=1 // pred_fallthru
      _
    // Predicated region
    $region38: #{tpu_custom_call.1} parent=1 // pred_check
      _
    $region39: #{tpu_custom_call.1} parent=1 // pred_check_branch
      %83 = sbr.rel (0) target = $region41
    $region40: #{tpu_custom_call.1} parent=1 // pred_region
      %s85 = ssub.s32 16, 16
      %86 = vsyncadd [#allocation10], %s85
      %s88 = sshll.u32 [#allocation11], 4
      %s89 = int_to_ptr.vmem [resolvable:$true] %s88
      %91 = dma.hbm_to_vmem [thread:$0]  %s9, 16, %s89, [#allocation10]
    $region41: #{tpu_custom_call.1} parent=1 // pred_fallthru
      _
    // Predicated region
    $region42: #{tpu_custom_call.1} parent=1 // pred_check
      _
    $region43: #{tpu_custom_call.1} parent=1 // pred_check_branch
      %93 = sbr.rel (0) target = $region45
    $region44: #{tpu_custom_call.1} parent=1 // pred_region
      %s95 = ssub.s32 128, 128
      %96 = vsyncadd [#allocation13], %s95
      %s98 = sshll.u32 [#allocation12], 4
      %s99 = int_to_ptr.vmem [resolvable:$true] %s98
      %101 = dma.hbm_to_vmem [thread:$0]  %s10, 128, %s99, [#allocation13]
    $region45: #{tpu_custom_call.1} parent=1 // pred_fallthru
      _
    // Predicated region
    $region46: #{tpu_custom_call.1} parent=1 // pred_check
      _
    $region47: #{tpu_custom_call.1} parent=1 // pred_check_branch
      %103 = sbr.rel (0) target = $region49
    $region48: #{tpu_custom_call.1} parent=1 // pred_region
      %s105 = ssub.s32 16, 16
      %106 = vsyncadd [#allocation13], %s105
      %s108 = sshll.u32 [#allocation14], 4
      %s109 = int_to_ptr.vmem [resolvable:$true] %s108
      %111 = dma.hbm_to_vmem [thread:$0]  %s11, 16, %s109, [#allocation13]
    $region49: #{tpu_custom_call.1} parent=1 // pred_fallthru
      _
    // Predicated region
    $region50: #{tpu_custom_call.1} parent=1 // pred_check
      _
    $region51: #{tpu_custom_call.1} parent=1 // pred_check_branch
      %113 = sbr.rel (0) target = $region53
    $region52: #{tpu_custom_call.1} parent=1 // pred_region
      _
    $region53: #{tpu_custom_call.1} parent=1 // pred_fallthru
      _
    // Predicated region
    $region54: #{tpu_custom_call.1} parent=1 // pred_check
      _
    $region55: #{tpu_custom_call.1} parent=1 // pred_check_branch
      %115 = sbr.rel (0) target = $region57
    $region56: #{tpu_custom_call.1} parent=1 // pred_region
      _
    $region57: #{tpu_custom_call.1} parent=1 // pred_fallthru
      _
    // Predicated region
    $region58: #{tpu_custom_call.1} parent=1 // pred_check
      _
    $region59: #{tpu_custom_call.1} parent=1 // pred_check_branch
      %117 = sbr.rel (0) target = $region61
    $region60: #{tpu_custom_call.1} parent=1 // pred_region
      _
    $region61: #{tpu_custom_call.1} parent=1 // pred_fallthru
      _
    // Predicated region
    $region62: #{tpu_custom_call.1} parent=1 // pred_check
      _
    $region63: #{tpu_custom_call.1} parent=1 // pred_check_branch
      %119 = sbr.rel (0) target = $region65
    $region64: #{tpu_custom_call.1} parent=1 // pred_region
      _
    $region65: #{tpu_custom_call.1} parent=1 // pred_fallthru
      _
    // Predicated region
    $region66: #{tpu_custom_call.1} parent=1 // pred_check
      _
    $region67: #{tpu_custom_call.1} parent=1 // pred_check_branch
      %121 = sbr.rel (0) target = $region69
    $region68: #{tpu_custom_call.1} parent=1 // pred_region
      _
    $region69: #{tpu_custom_call.1} parent=1 // pred_fallthru
      _
    // Predicated region
    $region70: #{tpu_custom_call.1} parent=1 // pred_check
      _
    $region71: #{tpu_custom_call.1} parent=1 // pred_check_branch
      %123 = sbr.rel (0) target = $region73
    $region72: #{tpu_custom_call.1} parent=1 // pred_region
      _
    $region73: #{tpu_custom_call.1} parent=1 // pred_fallthru
      _
    // Predicated region
    $region74: #{tpu_custom_call.1} parent=1 // pred_check
      _
    $region75: #{tpu_custom_call.1} parent=1 // pred_check_branch
      %125 = sbr.rel (0) target = $region77
    $region76: #{tpu_custom_call.1} parent=1 // pred_region
      _
    $region77: #{tpu_custom_call.1} parent=1 // pred_fallthru
      _
    // Predicated region
    $region78: #{tpu_custom_call.1} parent=1 // pred_check
      _
    $region79: #{tpu_custom_call.1} parent=1 // pred_check_branch
      %127 = sbr.rel (0) target = $region81
    $region80: #{tpu_custom_call.1} parent=1 // pred_region
      _
    $region81: #{tpu_custom_call.1} parent=1 // pred_fallthru
      _
    // Predicated region
    $region82: #{tpu_custom_call.1} parent=1 // pred_check
      _
    $region83: #{tpu_custom_call.1} parent=1 // pred_check_branch
      %129 = sbr.rel (0) target = $region85
    $region84: #{tpu_custom_call.1} parent=1 // pred_region
      %130 = dma.done [#allocation4], 128
    $region85: #{tpu_custom_call.1} parent=1 // pred_fallthru
      _
    // Predicated region
    $region86: #{tpu_custom_call.1} parent=1 // pred_check
      _
    $region87: #{tpu_custom_call.1} parent=1 // pred_check_branch
      %132 = sbr.rel (0) target = $region89
    $region88: #{tpu_custom_call.1} parent=1 // pred_region
      %133 = dma.done [#allocation7], 16
    $region89: #{tpu_custom_call.1} parent=1 // pred_fallthru
      _
    // Predicated region
    $region90: #{tpu_custom_call.1} parent=1 // pred_check
      _
    $region91: #{tpu_custom_call.1} parent=1 // pred_check_branch
      %135 = sbr.rel (0) target = $region93
    $region92: #{tpu_custom_call.1} parent=1 // pred_region
      %136 = dma.done [#allocation7], 16
    $region93: #{tpu_custom_call.1} parent=1 // pred_fallthru
      _
    // Predicated region
    $region94: #{tpu_custom_call.1} parent=1 // pred_check
      _
    $region95: #{tpu_custom_call.1} parent=1 // pred_check_branch
      %138 = sbr.rel (0) target = $region97
    $region96: #{tpu_custom_call.1} parent=1 // pred_region
      %139 = dma.done [#allocation10], 16
    $region97: #{tpu_custom_call.1} parent=1 // pred_fallthru
      _
    // Predicated region
    $region98: #{tpu_custom_call.1} parent=1 // pred_check
      _
    $region99: #{tpu_custom_call.1} parent=1 // pred_check_branch
      %141 = sbr.rel (0) target = $region101
    $region100: #{tpu_custom_call.1} parent=1 // pred_region
      %142 = dma.done [#allocation10], 16
    $region101: #{tpu_custom_call.1} parent=1 // pred_fallthru
      _
    // Predicated region
    $region102: #{tpu_custom_call.1} parent=1 // pred_check
      _
    $region103: #{tpu_custom_call.1} parent=1 // pred_check_branch
      %144 = sbr.rel (0) target = $region105
    $region104: #{tpu_custom_call.1} parent=1 // pred_region
      %145 = dma.done [#allocation13], 128
    $region105: #{tpu_custom_call.1} parent=1 // pred_fallthru
      _
    // Predicated region
    $region106: #{tpu_custom_call.1} parent=1 // pred_check
      _
    $region107: #{tpu_custom_call.1} parent=1 // pred_check_branch
      %147 = sbr.rel (0) target = $region109
    $region108: #{tpu_custom_call.1} parent=1 // pred_region
      %148 = dma.done [#allocation13], 16
    $region109: #{tpu_custom_call.1} parent=1 // pred_fallthru
      _
    %v149 = vld [vmem:[%s0] sm:$0xff]
    %v150 = vld [vmem:[%s1] sm:$0xff]
    %v151 = vld [vmem:[#allocation3] sm:$0xff]
    %v152 = vld [vmem:[%s3] sm:$0xff]
    %v153 = vld [vmem:[%s3 + $0x8] sm:$0xff]
    %v154 = vld [vmem:[#allocation6] sm:$0x1]
    %156 = vset.pattern.permute.xlu0 0
    %157 = vperm.xlu0 %156, %v150
    %v158 = vpop.permute.xlu0 %157
    %v161 = vlaneseq
    %v162 = vshrl.u32 %v161, 7
    %v163 = vsub.s32 0, %v162
    %v164 = vrot.slane %v154, %v163
    %v166 = vmul.f32 %v158, %v164
    %vm167 = vcmask 130048
    %v169 = vsel %vm167, %v149, 0
    %171 = vmatprep.subr.mxu0 0.0
    %172 = vmatpush1.msra.mxu0 0.0
    %173 = vmatprep.subr.mxu0 0.0
    %174 = vmatpush1.msra.mxu0 0.0
    %175 = vmatprep.subr.mxu0 0.0
    %176 = vmatpush1.msra.mxu0 0.0
    %177 = vmatprep.subr.mxu0 0.0
    %178 = vmatpush1.msra.mxu0 0.0
    %179 = vmatprep.subr.mxu0 0.0
    %180 = vmatpush1.msra.mxu0 0.0
    %181 = vmatprep.subr.mxu0 0.0
    %182 = vmatpush1.msra.mxu0 0.0
    %183 = vmatprep.subr.mxu0 0.0
    %184 = vmatpush1.msra.mxu0 0.0
    %185 = vmatprep.subr.mxu0 0.0
    %186 = vmatpush1.msra.mxu0 0.0
    %187 = vmatprep.subr.mxu0 0.0
    %188 = vmatpush1.msra.mxu0 0.0
    %189 = vmatprep.subr.mxu0 0.0
    %190 = vmatpush1.msra.mxu0 0.0
    %191 = vmatprep.subr.mxu0 0.0
    %192 = vmatpush1.msra.mxu0 0.0
    %193 = vmatprep.subr.mxu0 0.0
    %194 = vmatpush1.msra.mxu0 0.0
    %195 = vmatprep.subr.mxu0 0.0
    %196 = vmatpush1.msra.mxu0 0.0
    %197 = vmatprep.subr.mxu0 0.0
    %198 = vmatpush1.msra.mxu0 0.0
    %199 = vmatprep.subr.mxu0 0.0
    %200 = vmatpush1.msra.mxu0 %v153
    %201 = vmatprep.subr.mxu0 0.0
    %202 = vmatpush1.msra.mxu0 %v152
    %203 = vmatprep.subr.mxu0 0.0
    %204 = vmatpush2.msra.mxu0 0.0
    %205 = vmatprep.subr.mxu0 0.0
    %206 = vmatpush2.msra.mxu0 0.0
    %207 = vmatprep.subr.mxu0 0.0
    %208 = vmatpush2.msra.mxu0 0.0
    %209 = vmatprep.subr.mxu0 0.0
    %210 = vmatpush2.msra.mxu0 0.0
    %211 = vmatprep.subr.mxu0 0.0
    %212 = vmatpush2.msra.mxu0 0.0
    %213 = vmatprep.subr.mxu0 0.0
    %214 = vmatpush2.msra.mxu0 0.0
    %215 = vmatprep.subr.mxu0 0.0
    %216 = vmatpush2.msra.mxu0 0.0
    %217 = vmatprep.subr.mxu0 0.0
    %218 = vmatpush2.msra.mxu0 0.0
    %219 = vmatprep.subr.mxu0 0.0
    %220 = vmatpush2.msra.mxu0 0.0
    %221 = vmatprep.subr.mxu0 0.0
    %222 = vmatpush2.msra.mxu0 0.0
    %223 = vmatprep.subr.mxu0 0.0
    %224 = vmatpush2.msra.mxu0 0.0
    %225 = vmatprep.subr.mxu0 0.0
    %226 = vmatpush2.msra.mxu0 0.0
    %227 = vmatprep.subr.mxu0 0.0
    %228 = vmatpush2.msra.mxu0 0.0
    %229 = vmatprep.subr.mxu0 0.0
    %230 = vmatpush2.msra.mxu0 0.0
    %231 = vmatprep.subr.mxu0 0.0
    %232 = vmatpush2.msra.mxu0 0.0
    %233 = vmatprep.subr.mxu0 0.0
    %234 = vmatpush2.msra.mxu0 0.0
    %235 = vmatprep.mubr.f32.mxu0 0.0
    %236 = vmatmul.mubr.f32.gmra.mxu0 %v169
    %v237 = vpop.f32.mrf.mxu0
    %v238 = vadd.f32 %v166, %v237
    %v239 = vpop.f32.mrf.mxu0
    %240 = vdwg.mxu0
    %v241 = vld [vmem:[#allocation8] sm:$0x1]
    %v243 = vlaneseq
    %v244 = vshrl.u32 %v243, 7
    %v245 = vsub.s32 0, %v244
    %v246 = vrot.slane %v241, %v245
    %v248 = vadd.f32 %v238, %v246
    %v249 = vmax.f32 %v248, 0.0
    %v250 = vld [vmem:[%s6] sm:$0xff]
    %v251 = vld [vmem:[%s6 + $0x8] sm:$0xff]
    %v252 = vld [vmem:[%s6 + $0x10] sm:$0xff]
    %v253 = vld [vmem:[%s6 + $0x18] sm:$0xff]
    %v254 = vld [vmem:[#allocation9] sm:$0x1]
    %v256 = vlaneseq
    %v257 = vshrl.u32 %v256, 7
    %v258 = vsub.s32 0, %v257
    %v259 = vrot.slane %v254, %v258
    %vm261 = vcmask 261120
    %v263 = vsel %vm261, %v249, 0
    %265 = vmatprep.subr.mxu0 0.0
    %266 = vmatpush1.msra.mxu0 0.0
    %267 = vmatprep.subr.mxu0 0.0
    %268 = vmatpush1.msra.mxu0 0.0
    %269 = vmatprep.subr.mxu0 0.0
    %270 = vmatpush1.msra.mxu0 0.0
    %271 = vmatprep.subr.mxu0 0.0
    %272 = vmatpush1.msra.mxu0 0.0
    %273 = vmatprep.subr.mxu0 0.0
    %274 = vmatpush1.msra.mxu0 0.0
    %275 = vmatprep.subr.mxu0 0.0
    %276 = vmatpush1.msra.mxu0 0.0
    %277 = vmatprep.subr.mxu0 0.0
    %278 = vmatpush1.msra.mxu0 0.0
    %279 = vmatprep.subr.mxu0 0.0
    %280 = vmatpush1.msra.mxu0 0.0
    %281 = vmatprep.subr.mxu0 0.0
    %282 = vmatpush1.msra.mxu0 0.0
    %283 = vmatprep.subr.mxu0 0.0
    %284 = vmatpush1.msra.mxu0 0.0
    %285 = vmatprep.subr.mxu0 0.0
    %286 = vmatpush1.msra.mxu0 0.0
    %287 = vmatprep.subr.mxu0 0.0
    %288 = vmatpush1.msra.mxu0 0.0
    %289 = vmatprep.subr.mxu0 0.0
    %290 = vmatpush1.msra.mxu0 %v253
    %291 = vmatprep.subr.mxu0 0.0
    %292 = vmatpush1.msra.mxu0 %v252
    %293 = vmatprep.subr.mxu0 0.0
    %294 = vmatpush1.msra.mxu0 %v251
    %295 = vmatprep.subr.mxu0 0.0
    %296 = vmatpush1.msra.mxu0 %v250
    %297 = vmatprep.subr.mxu0 0.0
    %298 = vmatpush2.msra.mxu0 0.0
    %299 = vmatprep.subr.mxu0 0.0
    %300 = vmatpush2.msra.mxu0 0.0
    %301 = vmatprep.subr.mxu0 0.0
    %302 = vmatpush2.msra.mxu0 0.0
    %303 = vmatprep.subr.mxu0 0.0
    %304 = vmatpush2.msra.mxu0 0.0
    %305 = vmatprep.subr.mxu0 0.0
    %306 = vmatpush2.msra.mxu0 0.0
    %307 = vmatprep.subr.mxu0 0.0
    %308 = vmatpush2.msra.mxu0 0.0
    %309 = vmatprep.subr.mxu0 0.0
    %310 = vmatpush2.msra.mxu0 0.0
    %311 = vmatprep.subr.mxu0 0.0
    %312 = vmatpush2.msra.mxu0 0.0
    %313 = vmatprep.subr.mxu0 0.0
    %314 = vmatpush2.msra.mxu0 0.0
    %315 = vmatprep.subr.mxu0 0.0
    %316 = vmatpush2.msra.mxu0 0.0
    %317 = vmatprep.subr.mxu0 0.0
    %318 = vmatpush2.msra.mxu0 0.0
    %319 = vmatprep.subr.mxu0 0.0
    %320 = vmatpush2.msra.mxu0 0.0
    %321 = vmatprep.subr.mxu0 0.0
    %322 = vmatpush2.msra.mxu0 0.0
    %323 = vmatprep.subr.mxu0 0.0
    %324 = vmatpush2.msra.mxu0 0.0
    %325 = vmatprep.subr.mxu0 0.0
    %326 = vmatpush2.msra.mxu0 0.0
    %327 = vmatprep.subr.mxu0 0.0
    %328 = vmatpush2.msra.mxu0 0.0
    %329 = vmatprep.mubr.f32.mxu0 0.0
    %330 = vmatmul.mubr.f32.gmra.mxu0 %v263
    %v331 = vpop.f32.mrf.mxu0
    %v332 = vadd.f32 %v259, %v331
    %v333 = vpop.f32.mrf.mxu0
    %334 = vdwg.mxu0
    %v335 = vmax.f32 %v332, 0.0
    %v336 = vld [vmem:[%s8] sm:$0xff]
    %v337 = vld [vmem:[%s8 + $0x8] sm:$0xff]
    %v338 = vld [vmem:[%s8 + $0x10] sm:$0xff]
    %v339 = vld [vmem:[%s8 + $0x18] sm:$0xff]
    %v340 = vld [vmem:[#allocation11] sm:$0x1]
    %v342 = vlaneseq
    %v343 = vshrl.u32 %v342, 7
    %v344 = vsub.s32 0, %v343
    %v345 = vrot.slane %v340, %v344
    %v348 = vsel %vm261, %v335, 0
    %350 = vmatprep.subr.mxu0 0.0
    %351 = vmatpush1.msra.mxu0 0.0
    %352 = vmatprep.subr.mxu0 0.0
    %353 = vmatpush1.msra.mxu0 0.0
    %354 = vmatprep.subr.mxu0 0.0
    %355 = vmatpush1.msra.mxu0 0.0
    %356 = vmatprep.subr.mxu0 0.0
    %357 = vmatpush1.msra.mxu0 0.0
    %358 = vmatprep.subr.mxu0 0.0
    %359 = vmatpush1.msra.mxu0 0.0
    %360 = vmatprep.subr.mxu0 0.0
    %361 = vmatpush1.msra.mxu0 0.0
    %362 = vmatprep.subr.mxu0 0.0
    %363 = vmatpush1.msra.mxu0 0.0
    %364 = vmatprep.subr.mxu0 0.0
    %365 = vmatpush1.msra.mxu0 0.0
    %366 = vmatprep.subr.mxu0 0.0
    %367 = vmatpush1.msra.mxu0 0.0
    %368 = vmatprep.subr.mxu0 0.0
    %369 = vmatpush1.msra.mxu0 0.0
    %370 = vmatprep.subr.mxu0 0.0
    %371 = vmatpush1.msra.mxu0 0.0
    %372 = vmatprep.subr.mxu0 0.0
    %373 = vmatpush1.msra.mxu0 0.0
    %374 = vmatprep.subr.mxu0 0.0
    %375 = vmatpush1.msra.mxu0 %v339
    %376 = vmatprep.subr.mxu0 0.0
    %377 = vmatpush1.msra.mxu0 %v338
    %378 = vmatprep.subr.mxu0 0.0
    %379 = vmatpush1.msra.mxu0 %v337
    %380 = vmatprep.subr.mxu0 0.0
    %381 = vmatpush1.msra.mxu0 %v336
    %382 = vmatprep.subr.mxu0 0.0
    %383 = vmatpush2.msra.mxu0 0.0
    %384 = vmatprep.subr.mxu0 0.0
    %385 = vmatpush2.msra.mxu0 0.0
    %386 = vmatprep.subr.mxu0 0.0
    %387 = vmatpush2.msra.mxu0 0.0
    %388 = vmatprep.subr.mxu0 0.0
    %389 = vmatpush2.msra.mxu0 0.0
    %390 = vmatprep.subr.mxu0 0.0
    %391 = vmatpush2.msra.mxu0 0.0
    %392 = vmatprep.subr.mxu0 0.0
    %393 = vmatpush2.msra.mxu0 0.0
    %394 = vmatprep.subr.mxu0 0.0
    %395 = vmatpush2.msra.mxu0 0.0
    %396 = vmatprep.subr.mxu0 0.0
    %397 = vmatpush2.msra.mxu0 0.0
    %398 = vmatprep.subr.mxu0 0.0
    %399 = vmatpush2.msra.mxu0 0.0
    %400 = vmatprep.subr.mxu0 0.0
    %401 = vmatpush2.msra.mxu0 0.0
    %402 = vmatprep.subr.mxu0 0.0
    %403 = vmatpush2.msra.mxu0 0.0
    %404 = vmatprep.subr.mxu0 0.0
    %405 = vmatpush2.msra.mxu0 0.0
    %406 = vmatprep.subr.mxu0 0.0
    %407 = vmatpush2.msra.mxu0 0.0
    %408 = vmatprep.subr.mxu0 0.0
    %409 = vmatpush2.msra.mxu0 0.0
    %410 = vmatprep.subr.mxu0 0.0
    %411 = vmatpush2.msra.mxu0 0.0
    %412 = vmatprep.subr.mxu0 0.0
    %413 = vmatpush2.msra.mxu0 0.0
    %414 = vmatprep.mubr.f32.mxu0 0.0
    %415 = vmatmul.mubr.f32.gmra.mxu0 %v348
    %v416 = vpop.f32.mrf.mxu0
    %v417 = vadd.f32 %v345, %v416
    %v418 = vpop.f32.mrf.mxu0
    %419 = vdwg.mxu0
    %v420 = vmul.f32 %v417, 0.5
    %v421 = vmul.f32 %v420, 1.442695
    %v422 = vpow.pop %v421
    %424 = vrot.lane.b32.xlu0 %v422, 120
    %v425 = vpop.permute.xlu0 %424
    %v427 = vmul.f32 %v151, %v425
    %v428 = vadd.f32 %v427, %v417
    %v429 = vld [vmem:[#allocation12] sm:$0xff]
    %v430 = vld [vmem:[#allocation14] sm:$0x1]
    %v432 = vlaneseq
    %v433 = vshrl.u32 %v432, 7
    %v434 = vsub.s32 0, %v433
    %v435 = vrot.slane %v430, %v434
    %vm437 = vcmask 64512
    %v439 = vsel %vm437, %v428, 0
    %441 = vmatprep.subr.mxu0 0.0
    %442 = vmatpush1.msra.mxu0 0.0
    %443 = vmatprep.subr.mxu0 0.0
    %444 = vmatpush1.msra.mxu0 0.0
    %445 = vmatprep.subr.mxu0 0.0
    %446 = vmatpush1.msra.mxu0 0.0
    %447 = vmatprep.subr.mxu0 0.0
    %448 = vmatpush1.msra.mxu0 0.0
    %449 = vmatprep.subr.mxu0 0.0
    %450 = vmatpush1.msra.mxu0 0.0
    %451 = vmatprep.subr.mxu0 0.0
    %452 = vmatpush1.msra.mxu0 0.0
    %453 = vmatprep.subr.mxu0 0.0
    %454 = vmatpush1.msra.mxu0 0.0
    %455 = vmatprep.subr.mxu0 0.0
    %456 = vmatpush1.msra.mxu0 0.0
    %457 = vmatprep.subr.mxu0 0.0
    %458 = vmatpush1.msra.mxu0 0.0
    %459 = vmatprep.subr.mxu0 0.0
    %460 = vmatpush1.msra.mxu0 0.0
    %461 = vmatprep.subr.mxu0 0.0
    %462 = vmatpush1.msra.mxu0 0.0
    %463 = vmatprep.subr.mxu0 0.0
    %464 = vmatpush1.msra.mxu0 0.0
    %465 = vmatprep.subr.mxu0 0.0
    %466 = vmatpush1.msra.mxu0 0.0
    %467 = vmatprep.subr.mxu0 0.0
    %468 = vmatpush1.msra.mxu0 0.0
    %469 = vmatprep.subr.mxu0 0.0
    %470 = vmatpush1.msra.mxu0 0.0
    %471 = vmatprep.subr.mxu0 0.0
    %472 = vmatpush1.msra.mxu0 %v429
    %473 = vmatprep.subr.mxu0 0.0
    %474 = vmatpush2.msra.mxu0 0.0
    %475 = vmatprep.subr.mxu0 0.0
    %476 = vmatpush2.msra.mxu0 0.0
    %477 = vmatprep.subr.mxu0 0.0
    %478 = vmatpush2.msra.mxu0 0.0
    %479 = vmatprep.subr.mxu0 0.0
    %480 = vmatpush2.msra.mxu0 0.0
    %481 = vmatprep.subr.mxu0 0.0
    %482 = vmatpush2.msra.mxu0 0.0
    %483 = vmatprep.subr.mxu0 0.0
    %484 = vmatpush2.msra.mxu0 0.0
    %485 = vmatprep.subr.mxu0 0.0
    %486 = vmatpush2.msra.mxu0 0.0
    %487 = vmatprep.subr.mxu0 0.0
    %488 = vmatpush2.msra.mxu0 0.0
    %489 = vmatprep.subr.mxu0 0.0
    %490 = vmatpush2.msra.mxu0 0.0
    %491 = vmatprep.subr.mxu0 0.0
    %492 = vmatpush2.msra.mxu0 0.0
    %493 = vmatprep.subr.mxu0 0.0
    %494 = vmatpush2.msra.mxu0 0.0
    %495 = vmatprep.subr.mxu0 0.0
    %496 = vmatpush2.msra.mxu0 0.0
    %497 = vmatprep.subr.mxu0 0.0
    %498 = vmatpush2.msra.mxu0 0.0
    %499 = vmatprep.subr.mxu0 0.0
    %500 = vmatpush2.msra.mxu0 0.0
    %501 = vmatprep.subr.mxu0 0.0
    %502 = vmatpush2.msra.mxu0 0.0
    %503 = vmatprep.subr.mxu0 0.0
    %504 = vmatpush2.msra.mxu0 0.0
    %505 = vmatprep.mubr.f32.mxu0 0.0
    %506 = vmatmul.mubr.f32.gmra.mxu0 %v439
    %v507 = vpop.f32.mrf.mxu0
    %v508 = vadd.f32 %v435, %v507
    %v509 = vpop.f32.mrf.mxu0
    %510 = vdwg.mxu0
    %v511 = vmax.f32 %v508, 0.0
    %v512 = vld [vmem:[%s12] sm:$0xff]
    %v513 = vld [vmem:[%s12 + $0x8] sm:$0xff]
    %v514 = vld [vmem:[%s12 + $0x10] sm:$0xff]
    %v515 = vld [vmem:[%s12 + $0x18] sm:$0xff]
    %v516 = vld [vmem:[%s13] sm:$0x1]
    %v518 = vlaneseq
    %v519 = vshrl.u32 %v518, 7
    %v520 = vsub.s32 0, %v519
    %v521 = vrot.slane %v516, %v520
    %v524 = vsel %vm261, %v511, 0
    %526 = vmatprep.subr.mxu0 0.0
    %527 = vmatpush1.msra.mxu0 0.0
    %528 = vmatprep.subr.mxu0 0.0
    %529 = vmatpush1.msra.mxu0 0.0
    %530 = vmatprep.subr.mxu0 0.0
    %531 = vmatpush1.msra.mxu0 0.0
    %532 = vmatprep.subr.mxu0 0.0
    %533 = vmatpush1.msra.mxu0 0.0
    %534 = vmatprep.subr.mxu0 0.0
    %535 = vmatpush1.msra.mxu0 0.0
    %536 = vmatprep.subr.mxu0 0.0
    %537 = vmatpush1.msra.mxu0 0.0
    %538 = vmatprep.subr.mxu0 0.0
    %539 = vmatpush1.msra.mxu0 0.0
    %540 = vmatprep.subr.mxu0 0.0
    %541 = vmatpush1.msra.mxu0 0.0
    %542 = vmatprep.subr.mxu0 0.0
    %543 = vmatpush1.msra.mxu0 0.0
    %544 = vmatprep.subr.mxu0 0.0
    %545 = vmatpush1.msra.mxu0 0.0
    %546 = vmatprep.subr.mxu0 0.0
    %547 = vmatpush1.msra.mxu0 0.0
    %548 = vmatprep.subr.mxu0 0.0
    %549 = vmatpush1.msra.mxu0 0.0
    %550 = vmatprep.subr.mxu0 0.0
    %551 = vmatpush1.msra.mxu0 %v515
    %552 = vmatprep.subr.mxu0 0.0
    %553 = vmatpush1.msra.mxu0 %v514
    %554 = vmatprep.subr.mxu0 0.0
    %555 = vmatpush1.msra.mxu0 %v513
    %556 = vmatprep.subr.mxu0 0.0
    %557 = vmatpush1.msra.mxu0 %v512
    %558 = vmatprep.subr.mxu0 0.0
    %559 = vmatpush2.msra.mxu0 0.0
    %560 = vmatprep.subr.mxu0 0.0
    %561 = vmatpush2.msra.mxu0 0.0
    %562 = vmatprep.subr.mxu0 0.0
    %563 = vmatpush2.msra.mxu0 0.0
    %564 = vmatprep.subr.mxu0 0.0
    %565 = vmatpush2.msra.mxu0 0.0
    %566 = vmatprep.subr.mxu0 0.0
    %567 = vmatpush2.msra.mxu0 0.0
    %568 = vmatprep.subr.mxu0 0.0
    %569 = vmatpush2.msra.mxu0 0.0
    %570 = vmatprep.subr.mxu0 0.0
    %571 = vmatpush2.msra.mxu0 0.0
    %572 = vmatprep.subr.mxu0 0.0
    %573 = vmatpush2.msra.mxu0 0.0
    %574 = vmatprep.subr.mxu0 0.0
    %575 = vmatpush2.msra.mxu0 0.0
    %576 = vmatprep.subr.mxu0 0.0
    %577 = vmatpush2.msra.mxu0 0.0
    %578 = vmatprep.subr.mxu0 0.0
    %579 = vmatpush2.msra.mxu0 0.0
    %580 = vmatprep.subr.mxu0 0.0
    %581 = vmatpush2.msra.mxu0 0.0
    %582 = vmatprep.subr.mxu0 0.0
    %583 = vmatpush2.msra.mxu0 0.0
    %584 = vmatprep.subr.mxu0 0.0
    %585 = vmatpush2.msra.mxu0 0.0
    %586 = vmatprep.subr.mxu0 0.0
    %587 = vmatpush2.msra.mxu0 0.0
    %588 = vmatprep.subr.mxu0 0.0
    %589 = vmatpush2.msra.mxu0 0.0
    %590 = vmatprep.mubr.f32.mxu0 0.0
    %591 = vmatmul.mubr.f32.gmra.mxu0 %v524
    %v592 = vpop.f32.mrf.mxu0
    %v593 = vadd.f32 %v521, %v592
    %v594 = vpop.f32.mrf.mxu0
    %595 = vdwg.mxu0
    %v596 = vmax.f32 %v593, 0.0
    %v597 = vld [vmem:[%s14] sm:$0xff]
    %v598 = vld [vmem:[%s14 + $0x8] sm:$0xff]
    %v599 = vld [vmem:[%s14 + $0x10] sm:$0xff]
    %v600 = vld [vmem:[%s14 + $0x18] sm:$0xff]
    %v601 = vld [vmem:[%s15] sm:$0x1]
    %v603 = vlaneseq
    %v604 = vshrl.u32 %v603, 7
    %v605 = vsub.s32 0, %v604
    %v606 = vrot.slane %v601, %v605
    %v609 = vsel %vm261, %v596, 0
    %611 = vmatprep.subr.mxu0 0.0
    %612 = vmatpush1.msra.mxu0 0.0
    %613 = vmatprep.subr.mxu0 0.0
    %614 = vmatpush1.msra.mxu0 0.0
    %615 = vmatprep.subr.mxu0 0.0
    %616 = vmatpush1.msra.mxu0 0.0
    %617 = vmatprep.subr.mxu0 0.0
    %618 = vmatpush1.msra.mxu0 0.0
    %619 = vmatprep.subr.mxu0 0.0
    %620 = vmatpush1.msra.mxu0 0.0
    %621 = vmatprep.subr.mxu0 0.0
    %622 = vmatpush1.msra.mxu0 0.0
    %623 = vmatprep.subr.mxu0 0.0
    %624 = vmatpush1.msra.mxu0 0.0
    %625 = vmatprep.subr.mxu0 0.0
    %626 = vmatpush1.msra.mxu0 0.0
    %627 = vmatprep.subr.mxu0 0.0
    %628 = vmatpush1.msra.mxu0 0.0
    %629 = vmatprep.subr.mxu0 0.0
    %630 = vmatpush1.msra.mxu0 0.0
    %631 = vmatprep.subr.mxu0 0.0
    %632 = vmatpush1.msra.mxu0 0.0
    %633 = vmatprep.subr.mxu0 0.0
    %634 = vmatpush1.msra.mxu0 0.0
    %635 = vmatprep.subr.mxu0 0.0
    %636 = vmatpush1.msra.mxu0 %v600
    %637 = vmatprep.subr.mxu0 0.0
    %638 = vmatpush1.msra.mxu0 %v599
    %639 = vmatprep.subr.mxu0 0.0
    %640 = vmatpush1.msra.mxu0 %v598
    %641 = vmatprep.subr.mxu0 0.0
    %642 = vmatpush1.msra.mxu0 %v597
    %643 = vmatprep.subr.mxu0 0.0
    %644 = vmatpush2.msra.mxu0 0.0
    %645 = vmatprep.subr.mxu0 0.0
    %646 = vmatpush2.msra.mxu0 0.0
    %647 = vmatprep.subr.mxu0 0.0
    %648 = vmatpush2.msra.mxu0 0.0
    %649 = vmatprep.subr.mxu0 0.0
    %650 = vmatpush2.msra.mxu0 0.0
    %651 = vmatprep.subr.mxu0 0.0
    %652 = vmatpush2.msra.mxu0 0.0
    %653 = vmatprep.subr.mxu0 0.0
    %654 = vmatpush2.msra.mxu0 0.0
    %655 = vmatprep.subr.mxu0 0.0
    %656 = vmatpush2.msra.mxu0 0.0
    %657 = vmatprep.subr.mxu0 0.0
    %658 = vmatpush2.msra.mxu0 0.0
    %659 = vmatprep.subr.mxu0 0.0
    %660 = vmatpush2.msra.mxu0 0.0
    %661 = vmatprep.subr.mxu0 0.0
    %662 = vmatpush2.msra.mxu0 0.0
    %663 = vmatprep.subr.mxu0 0.0
    %664 = vmatpush2.msra.mxu0 0.0
    %665 = vmatprep.subr.mxu0 0.0
    %666 = vmatpush2.msra.mxu0 0.0
    %667 = vmatprep.subr.mxu0 0.0
    %668 = vmatpush2.msra.mxu0 0.0
    %669 = vmatprep.subr.mxu0 0.0
    %670 = vmatpush2.msra.mxu0 0.0
    %671 = vmatprep.subr.mxu0 0.0
    %672 = vmatpush2.msra.mxu0 0.0
    %673 = vmatprep.subr.mxu0 0.0
    %674 = vmatpush2.msra.mxu0 0.0
    %675 = vmatprep.mubr.f32.mxu0 0.0
    %676 = vmatmul.mubr.f32.gmra.mxu0 %v609
    %v677 = vpop.f32.mrf.mxu0
    %v678 = vadd.f32 %v606, %v677
    %v679 = vpop.f32.mrf.mxu0
    %680 = vdwg.mxu0
    %v681 = vld [vmem:[%s16] sm:$0xff]
    %v682 = vld [vmem:[%s17] sm:$0x1]
    %v684 = vlaneseq
    %v685 = vshrl.u32 %v684, 7
    %v686 = vsub.s32 0, %v685
    %v687 = vrot.slane %v682, %v686
    %689 = vmatprep.subr.mxu0 0.0
    %690 = vmatpush1.msra.mxu0 0.0
    %691 = vmatprep.subr.mxu0 0.0
    %692 = vmatpush1.msra.mxu0 0.0
    %693 = vmatprep.subr.mxu0 0.0
    %694 = vmatpush1.msra.mxu0 0.0
    %695 = vmatprep.subr.mxu0 0.0
    %696 = vmatpush1.msra.mxu0 0.0
    %697 = vmatprep.subr.mxu0 0.0
    %698 = vmatpush1.msra.mxu0 0.0
    %699 = vmatprep.subr.mxu0 0.0
    %700 = vmatpush1.msra.mxu0 0.0
    %701 = vmatprep.subr.mxu0 0.0
    %702 = vmatpush1.msra.mxu0 0.0
    %703 = vmatprep.subr.mxu0 0.0
    %704 = vmatpush1.msra.mxu0 0.0
    %705 = vmatprep.subr.mxu0 0.0
    %706 = vmatpush1.msra.mxu0 0.0
    %707 = vmatprep.subr.mxu0 0.0
    %708 = vmatpush1.msra.mxu0 0.0
    %709 = vmatprep.subr.mxu0 0.0
    %710 = vmatpush1.msra.mxu0 0.0
    %711 = vmatprep.subr.mxu0 0.0
    %712 = vmatpush1.msra.mxu0 0.0
    %713 = vmatprep.subr.mxu0 0.0
    %714 = vmatpush1.msra.mxu0 0.0
    %715 = vmatprep.subr.mxu0 0.0
    %716 = vmatpush1.msra.mxu0 0.0
    %717 = vmatprep.subr.mxu0 0.0
    %718 = vmatpush1.msra.mxu0 0.0
    %719 = vmatprep.subr.mxu0 0.0
    %720 = vmatpush1.msra.mxu0 %v681
    %721 = vmatprep.subr.mxu0 0.0
    %722 = vmatpush2.msra.mxu0 0.0
    %723 = vmatprep.subr.mxu0 0.0
    %724 = vmatpush2.msra.mxu0 0.0
    %725 = vmatprep.subr.mxu0 0.0
    %726 = vmatpush2.msra.mxu0 0.0
    %727 = vmatprep.subr.mxu0 0.0
    %728 = vmatpush2.msra.mxu0 0.0
    %729 = vmatprep.subr.mxu0 0.0
    %730 = vmatpush2.msra.mxu0 0.0
    %731 = vmatprep.subr.mxu0 0.0
    %732 = vmatpush2.msra.mxu0 0.0
    %733 = vmatprep.subr.mxu0 0.0
    %734 = vmatpush2.msra.mxu0 0.0
    %735 = vmatprep.subr.mxu0 0.0
    %736 = vmatpush2.msra.mxu0 0.0
    %737 = vmatprep.subr.mxu0 0.0
    %738 = vmatpush2.msra.mxu0 0.0
    %739 = vmatprep.subr.mxu0 0.0
    %740 = vmatpush2.msra.mxu0 0.0
    %741 = vmatprep.subr.mxu0 0.0
    %742 = vmatpush2.msra.mxu0 0.0
    %743 = vmatprep.subr.mxu0 0.0
    %744 = vmatpush2.msra.mxu0 0.0
    %745 = vmatprep.subr.mxu0 0.0
    %746 = vmatpush2.msra.mxu0 0.0
    %747 = vmatprep.subr.mxu0 0.0
    %748 = vmatpush2.msra.mxu0 0.0
    %749 = vmatprep.subr.mxu0 0.0
    %750 = vmatpush2.msra.mxu0 0.0
    %751 = vmatprep.subr.mxu0 0.0
    %752 = vmatpush2.msra.mxu0 0.0
    %753 = vmatprep.mubr.f32.mxu0 0.0
    %754 = vmatmul.mubr.f32.gmra.mxu0 %v439
    %v755 = vpop.f32.mrf.mxu0
    %v756 = vadd.f32 %v687, %v755
    %v757 = vpop.f32.mrf.mxu0
    %758 = vdwg.mxu0
    %v759 = vmax.f32 %v756, 0.0
    %v760 = vld [vmem:[%s18] sm:$0x1]
    %v762 = vlaneseq
    %v763 = vshrl.u32 %v762, 7
    %v764 = vsub.s32 0, %v763
    %v765 = vrot.slane %v760, %v764
    %v767 = vmul.f32 %v759, %v765
    %v768 = vsel %vm437, %v767, 0.0
    %769 = vadd.xlane.f32.xlu0 %v768
    %v770 = vpop.xlane.xlu0 %769
    %v771 = vld [vmem:[#allocation2] sm:$0x1]
    %v773 = vlaneseq
    %v774 = vshrl.u32 %v773, 7
    %v775 = vsub.s32 0, %v774
    %v776 = vrot.slane %v771, %v775
    %v778 = vadd.f32 %v770, %v776
    %v779 = vxor.u32 %v778, 2147483648
    %v780 = vmul.f32 %v779, 1.442695
    %v781 = vpow.pop %v780
    %v782 = vadd.f32 %v781, 1.0
    %v783 = vrcp.pop %v782
    %v784 = vmul.f32 1.0, %v783
    %786 = vrot.lane.b32.xlu0 %v784, 16
    %v787 = vpop.permute.xlu0 %786
    %790 = vrot.lane.b32.xlu0 %v417, 17
    %v791 = vpop.permute.xlu0 %790
    %793 = vrot.lane.b32.xlu0 %v428, 33
    %v794 = vpop.permute.xlu0 %793
    %v796 = vsel %vm167, %v678, %v787
    %vm797 = vcmask 138240
    %v798 = vsel %vm797, %v796, %v791
    %vm799 = vcmask 203776
    %v800 = vsel %vm799, %v798, %v791
    %vm801 = vcmask 269312
    %v802 = vsel %vm801, %v800, %v794
    %vm803 = vcmask 334848
    %v804 = vsel %vm803, %v802, 0.0
    %805 = vst [vmem:[#allocation15] sm:$0xff] %v804
    // Predicated region
    $region110: #{tpu_custom_call.1} parent=1 // pred_check
      _
    $region111: #{tpu_custom_call.1} parent=1 // pred_check_branch
      %807 = sbr.rel (0) target = $region113
    $region112: #{tpu_custom_call.1} parent=1 // pred_region
      %s809 = ssub.s32 128, 128
      %810 = vsyncadd [#allocation5], %s809
      %s812 = sshll.u32 [#allocation15], 4
      %s813 = int_to_ptr.vmem [resolvable:$true] %s812
      %815 = dma.vmem_to_hbm [thread:$0]  %s813, 128, %s20, [#allocation5]
    $region113: #{tpu_custom_call.1} parent=1 // pred_fallthru
      _
    // Predicated region
    $region114: #{tpu_custom_call.1} parent=1 // pred_check
      _
    $region115: #{tpu_custom_call.1} parent=1 // pred_check_branch
      %817 = sbr.rel (0) target = $region117
    $region116: #{tpu_custom_call.1} parent=1 // pred_region
      %818 = dma.done [#allocation5], 128
    $region117: #{tpu_custom_call.1} parent=1 // pred_fallthru
      _
    %819 = vsyncpa [#allocation4], 1
    %820 = vsyncpa [#allocation7], 1
    %821 = vsyncpa [#allocation10], 1
    %822 = vsyncpa [#allocation13], 1
    %823 = vsyncpa [#allocation5], 1

</llo_original>
